<compile_context>
chip_gen: v7x
topology: tpu7x:2x2x1
jax: 0.10.0
libtpu: 0.0.40
codegen_flags: <defaults>
</compile_context>

<pallas_src>
import jax
import jax.numpy as jnp
from jax.experimental import pallas as pl
from jax.experimental.pallas import tpu as pltpu


def _qfunc_kernel(obs_ref, act_ref, w1o_ref, w1a_ref, b1_ref, w2_ref, b2_ref,
                  w3r_ref, b3_ref, out_ref):
    cd = w1o_ref.dtype  # MXU-operand compute dtype (weights pre-cast in wrapper)

    # Layer 1: [obs | act] @ W1 + b1 as two accumulated dots (no concat pass).
    # The obs/act tiles are cast to the compute dtype in-VMEM (free when the
    # kernel is mem-bound); accumulation is f32.
    h = jnp.dot(obs_ref[...].astype(cd), w1o_ref[...],
                preferred_element_type=jnp.float32)
    h = h + jnp.dot(act_ref[...].astype(cd), w1a_ref[...],
                    preferred_element_type=jnp.float32)
    h = jnp.maximum(h + b1_ref[...], 0.0)

    # Layer 2: h @ W2 + b2, ReLU.  MXU operands in compute dtype, f32 accum.
    h = jnp.dot(h.astype(w2_ref.dtype), w2_ref[...],
                preferred_element_type=jnp.float32)
    h = jnp.maximum(h + b2_ref[...], 0.0)

    # Output layer (1 unit): VPU multiply + lane reduction against the (1, h2)
    # W3 row; result written as a lane-dense (1, TB) row.
    q = jnp.sum(h * w3r_ref[...], axis=-1) + b3_ref[0, 0]       # (TB,)
    out_ref[...] = q[None, :].astype(out_ref.dtype)


def _choose_batch_tile(batch, block_b):
    """Batch tile: multiple of 128, <= padded batch, and >=2 grid steps when
    the batch allows it (v7x megacore sharding + DMA/compute overlap)."""
    def round_down_128(n):
        return max(128, (n // 128) * 128)

    b_up = ((batch + 127) // 128) * 128
    tb = min(round_down_128(block_b), b_up)
    if b_up >= 256 and -(-b_up // tb) < 2:     # single-step grid -> split it
        tb = round_down_128(b_up // 2)
    return tb


def mlp_q_function(obs, act, params, *, compute_dtype=jnp.bfloat16, block_b=2048):
    """Forward pass of MLPQFunction in a single batch-tiled pallas_call.

    compute_dtype: dtype of the MXU operands (default bf16: full MXU rate and
                   half the HBM weight bytes on all generations); bias / ReLU /
                   accumulation always stay in float32.
    block_b:       requested batch tile (rounded down to a multiple of 128).
                   Keep <= ~2048 on v5e unless vmem_limit_bytes is raised.
    """
    w1, b1, w2, b2, w3_row, b3 = params
    B, obs_dim = obs.shape
    act_dim = act.shape[1]
    in_dim = obs_dim + act_dim
    h1 = w1.shape[1]
    h2 = w2.shape[1]

    tb = _choose_batch_tile(B, block_b)
    n_tiles = -(-B // tb)
    b_out = n_tiles * tb          # lane-dense output row length (>= B)

    # Tiny one-time weight prep: split W1 along its input rows so the kernel
    # consumes obs and act directly (no wrapper concat / cast / pad HBM passes
    # over the batch-sized x).
    w1o = w1[:obs_dim].astype(compute_dtype)
    w1a = w1[obs_dim:].astype(compute_dtype)
    w2c = w2.astype(compute_dtype)
    b1f = b1.reshape(1, h1).astype(jnp.float32)
    b2f = b2.reshape(1, h2).astype(jnp.float32)
    w3f = w3_row.reshape(1, h2).astype(jnp.float32)
    b3f = b3.reshape(1, 1).astype(jnp.float32)

    w_itemsize = jnp.dtype(compute_dtype).itemsize
    x_itemsize = jnp.dtype(obs.dtype).itemsize
    cost = pl.CostEstimate(
        flops=2 * b_out * (in_dim * h1 + h1 * h2 + h2),
        transcendentals=0,
        bytes_accessed=(B * in_dim * x_itemsize                 # obs + act
                        + (in_dim * h1 + h1 * h2) * w_itemsize  # W1, W2
                        + 4 * (h1 + h2 + h2 + 1)                # b1, b2, W3 row, b3
                        + 4 * b_out),                           # output row
    )

    q_row = pl.pallas_call(
        _qfunc_kernel,
        out_shape=jax.ShapeDtypeStruct((1, b_out), jnp.float32),
        grid=(n_tiles,),
        in_specs=[
            pl.BlockSpec((tb, obs_dim), lambda i: (i, 0)),      # obs: streamed over batch
            pl.BlockSpec((tb, act_dim), lambda i: (i, 0)),      # act: streamed over batch
            pl.BlockSpec((obs_dim, h1), lambda i: (0, 0)),      # W1[:obs_dim]: VMEM-resident
            pl.BlockSpec((act_dim, h1), lambda i: (0, 0)),      # W1[obs_dim:]: VMEM-resident
            pl.BlockSpec((1, h1), lambda i: (0, 0)),            # b1
            pl.BlockSpec((h1, h2), lambda i: (0, 0)),           # W2
            pl.BlockSpec((1, h2), lambda i: (0, 0)),            # b2
            pl.BlockSpec((1, h2), lambda i: (0, 0)),            # W3 row (W3^T)
            pl.BlockSpec(memory_space=pltpu.MemorySpace.SMEM),  # b3 scalar
        ],
        out_specs=pl.BlockSpec((1, tb), lambda i: (0, i)),      # lane-dense output
        compiler_params=pltpu.CompilerParams(
            dimension_semantics=("parallel",),                  # megacore on v7x
        ),
        cost_estimate=cost,
    )(obs, act, w1o, w1a, b1f, w2c, b2f, w3f, b3f)

    # torch.squeeze(q, -1): drop tile padding and return shape (B,).
    return q_row[0, :B]


def init_params(key, obs_dim, act_dim, hidden_sizes):
    """torch.nn.Linear-style U(-1/sqrt(fan_in), 1/sqrt(fan_in)) init."""
    h1, h2 = hidden_sizes
    in_dim = obs_dim + act_dim
    keys = jax.random.split(key, 6)

    def u(k, shape, fan_in):
        bound = 1.0 / float(fan_in) ** 0.5
        return jax.random.uniform(k, shape, jnp.float32, -bound, bound)

    w1 = u(keys[0], (in_dim, h1), in_dim)
    b1 = u(keys[1], (1, h1), in_dim)
    w2 = u(keys[2], (h1, h2), h1)
    b2 = u(keys[3], (1, h2), h1)
    w3_row = u(keys[4], (1, h2), h2)   # == W3.T for the 1-unit output layer
    b3 = u(keys[5], (1, 1), h2)
    return (w1, b1, w2, b2, w3_row, b3)


def reference_forward(obs, act, params, compute_dtype=jnp.float32):
    """Pure-JAX/XLA reference of the PyTorch forward pass."""
    w1, b1, w2, b2, w3_row, b3 = params
    x = jnp.concatenate([obs, act], axis=-1).astype(compute_dtype)
    h = jnp.dot(x, w1.astype(compute_dtype),
                preferred_element_type=jnp.float32) + b1
    h = jnp.maximum(h, 0.0)
    h = jnp.dot(h.astype(compute_dtype), w2.astype(compute_dtype),
                preferred_element_type=jnp.float32) + b2
    h = jnp.maximum(h, 0.0)
    q = jnp.sum(h * w3_row, axis=-1) + b3[0, 0]
    return q


if __name__ == "__main__":
    obs_dim, act_dim = 16, 8
    hidden_sizes = (32, 32)
    batch = 8

    key = jax.random.PRNGKey(0)
    k_obs, k_act, k_par = jax.random.split(key, 3)

    obs = jax.random.normal(k_obs, (batch, obs_dim), jnp.float32)
    act = jax.random.normal(k_act, (batch, act_dim), jnp.float32)
    params = init_params(k_par, obs_dim, act_dim, hidden_sizes)

    # f32 MXU-operand path: matches the PyTorch module semantics tightly.
    q_f32 = jax.block_until_ready(
        mlp_q_function(obs, act, params, compute_dtype=jnp.float32))
    q_ref = reference_forward(obs, act, params, compute_dtype=jnp.float32)
    assert q_f32.shape == (batch,)
    assert jnp.allclose(q_f32, q_ref, atol=1e-4, rtol=1e-4)

    # Default bf16 MXU-operand path (full MXU rate, half HBM bytes); f32 accum.
    q_bf16 = jax.block_until_ready(mlp_q_function(obs, act, params))
    q_ref_bf16 = reference_forward(obs, act, params, compute_dtype=jnp.bfloat16)
    assert q_bf16.shape == (batch,)
    assert jnp.allclose(q_bf16, q_ref_bf16, atol=1e-2, rtol=1e-2)
    assert jnp.allclose(q_bf16, q_ref, atol=5e-2, rtol=5e-2)

    # Non-multiple-of-128 batch: exercises partial last blocks (no wrapper pad)
    # and a multi-step "parallel" grid (megacore path on v7x).
    batch2 = 300
    k_obs2, k_act2 = jax.random.split(jax.random.PRNGKey(1), 2)
    obs2 = jax.random.normal(k_obs2, (batch2, obs_dim), jnp.float32)
    act2 = jax.random.normal(k_act2, (batch2, act_dim), jnp.float32)
    q2 = jax.block_until_ready(
        mlp_q_function(obs2, act2, params, compute_dtype=jnp.float32))
    q2_ref = reference_forward(obs2, act2, params, compute_dtype=jnp.float32)
    assert q2.shape == (batch2,)
    assert jnp.allclose(q2, q2_ref, atol=1e-4, rtol=1e-4)

    print("KERNEL_OK")
</pallas_src>

<mosaic_0001>
module attributes {stable_mosaic.version = 11 : i64} {
  func.func @_qfunc_kernel(%arg0: i32, %arg1: memref<128x16xf32, #tpu.memory_space<vmem>>, %arg2: memref<128x8xf32, #tpu.memory_space<vmem>>, %arg3: memref<16x32xf32, #tpu.memory_space<vmem>>, %arg4: memref<8x32xf32, #tpu.memory_space<vmem>>, %arg5: memref<1x32xf32, #tpu.memory_space<vmem>>, %arg6: memref<32x32xf32, #tpu.memory_space<vmem>>, %arg7: memref<1x32xf32, #tpu.memory_space<vmem>>, %arg8: memref<1x32xf32, #tpu.memory_space<vmem>>, %arg9: memref<1x1xf32, #tpu.memory_space<smem>>, %arg10: memref<1x128xf32, #tpu.memory_space<vmem>>) attributes {dimension_semantics = [#tpu.dimension_semantics<parallel>], iteration_bounds = array<i64: 1>, scalar_prefetch = 0 : i64, scratch_operands = 0 : i64, tpu.core_type = #tpu.core_type<tc>, window_params = [{transform_indices = @transform_0, window_bounds = array<i64: 128, 16>}, {transform_indices = @transform_1, window_bounds = array<i64: 128, 8>}, {pipeline_mode = #tpu.pipeline_mode<synchronous>, transform_indices = @transform_2, window_bounds = array<i64: 16, 32>}, {pipeline_mode = #tpu.pipeline_mode<synchronous>, transform_indices = @transform_3, window_bounds = array<i64: 8, 32>}, {pipeline_mode = #tpu.pipeline_mode<synchronous>, transform_indices = @transform_4, window_bounds = array<i64: 1, 32>}, {pipeline_mode = #tpu.pipeline_mode<synchronous>, transform_indices = @transform_5, window_bounds = array<i64: 32, 32>}, {pipeline_mode = #tpu.pipeline_mode<synchronous>, transform_indices = @transform_6, window_bounds = array<i64: 1, 32>}, {pipeline_mode = #tpu.pipeline_mode<synchronous>, transform_indices = @transform_7, window_bounds = array<i64: 1, 32>}, {transform_indices = @transform_8, window_bounds = array<i64: 1, 1>}, {transform_indices = @transform_9, window_bounds = array<i64: 1, 128>}]} {
    %c0 = arith.constant 0 : index
    %c0_0 = arith.constant 0 : index
    %0 = vector.load %arg1[%c0, %c0_0] : memref<128x16xf32, #tpu.memory_space<vmem>>, vector<128x16xf32>
    %c0_1 = arith.constant 0 : index
    %c0_2 = arith.constant 0 : index
    %1 = vector.load %arg3[%c0_1, %c0_2] : memref<16x32xf32, #tpu.memory_space<vmem>>, vector<16x32xf32>
    %cst = arith.constant dense<0.000000e+00> : vector<128x32xf32>
    %2 = tpu.matmul %0, %1, %cst {dimension_numbers = #tpu.dot_dimension_numbers<[1], [0], [0], [1], [0, 0, 1, 1], [], []>} : vector<128x16xf32>, vector<16x32xf32>, vector<128x32xf32> -> vector<128x32xf32>
    %c0_3 = arith.constant 0 : index
    %c0_4 = arith.constant 0 : index
    %3 = vector.load %arg2[%c0_3, %c0_4] : memref<128x8xf32, #tpu.memory_space<vmem>>, vector<128x8xf32>
    %c0_5 = arith.constant 0 : index
    %c0_6 = arith.constant 0 : index
    %4 = vector.load %arg4[%c0_5, %c0_6] : memref<8x32xf32, #tpu.memory_space<vmem>>, vector<8x32xf32>
    %cst_7 = arith.constant dense<0.000000e+00> : vector<128x32xf32>
    %5 = tpu.matmul %3, %4, %cst_7 {dimension_numbers = #tpu.dot_dimension_numbers<[1], [0], [0], [1], [0, 0, 1, 1], [], []>} : vector<128x8xf32>, vector<8x32xf32>, vector<128x32xf32> -> vector<128x32xf32>
    %6 = arith.addf %2, %5 : vector<128x32xf32>
    %c0_8 = arith.constant 0 : index
    %c0_9 = arith.constant 0 : index
    %7 = vector.load %arg5[%c0_8, %c0_9] : memref<1x32xf32, #tpu.memory_space<vmem>>, vector<1x32xf32>
    %8 = vector.broadcast %7 : vector<1x32xf32> to vector<128x32xf32>
    %9 = arith.addf %6, %8 : vector<128x32xf32>
    %cst_10 = arith.constant 0.000000e+00 : f32
    %10 = vector.broadcast %cst_10 : f32 to vector<128x32xf32>
    %11 = arith.maximumf %9, %10 : vector<128x32xf32>
    %c0_11 = arith.constant 0 : index
    %c0_12 = arith.constant 0 : index
    %12 = vector.load %arg6[%c0_11, %c0_12] : memref<32x32xf32, #tpu.memory_space<vmem>>, vector<32x32xf32>
    %cst_13 = arith.constant dense<0.000000e+00> : vector<128x32xf32>
    %13 = tpu.matmul %11, %12, %cst_13 {dimension_numbers = #tpu.dot_dimension_numbers<[1], [0], [0], [1], [0, 0, 1, 1], [], []>} : vector<128x32xf32>, vector<32x32xf32>, vector<128x32xf32> -> vector<128x32xf32>
    %c0_14 = arith.constant 0 : index
    %c0_15 = arith.constant 0 : index
    %14 = vector.load %arg7[%c0_14, %c0_15] : memref<1x32xf32, #tpu.memory_space<vmem>>, vector<1x32xf32>
    %15 = vector.broadcast %14 : vector<1x32xf32> to vector<128x32xf32>
    %16 = arith.addf %13, %15 : vector<128x32xf32>
    %cst_16 = arith.constant 0.000000e+00 : f32
    %17 = vector.broadcast %cst_16 : f32 to vector<128x32xf32>
    %18 = arith.maximumf %16, %17 : vector<128x32xf32>
    %c0_17 = arith.constant 0 : index
    %c0_18 = arith.constant 0 : index
    %19 = vector.load %arg8[%c0_17, %c0_18] : memref<1x32xf32, #tpu.memory_space<vmem>>, vector<1x32xf32>
    %20 = vector.broadcast %19 : vector<1x32xf32> to vector<128x32xf32>
    %21 = arith.mulf %18, %20 : vector<128x32xf32>
    %cst_19 = arith.constant dense<0.000000e+00> : vector<128xf32>
    %22 = vector.multi_reduction <add>, %21, %cst_19 [1] : vector<128x32xf32> to vector<128xf32>
    %c0_20 = arith.constant 0 : index
    %c0_21 = arith.constant 0 : index
    %23 = memref.load %arg9[%c0_20, %c0_21] : memref<1x1xf32, #tpu.memory_space<smem>>
    %24 = vector.broadcast %23 : f32 to vector<128xf32>
    %25 = arith.addf %22, %24 : vector<128xf32>
    %26 = vector.shape_cast %25 : vector<128xf32> to vector<1x128xf32>
    %c0_22 = arith.constant 0 : index
    %c0_23 = arith.constant 0 : index
    %27 = vector.load %arg10[%c0_22, %c0_23] : memref<1x128xf32, #tpu.memory_space<vmem>>, vector<1x128xf32>
    tpu.vector_store %arg10[%c0_22, %c0_23], %26 {strides = array<i32>} : memref<1x128xf32, #tpu.memory_space<vmem>>, vector<1x128xf32>,
    return
  }
  func.func @transform_0(%arg0: i32) -> (i32, i32) {
    %c0_i32 = arith.constant 0 : i32
    %c0_i32_0 = arith.constant 0 : i32
    return %arg0, %c0_i32 : i32, i32
  }
  func.func @transform_1(%arg0: i32) -> (i32, i32) {
    %c0_i32 = arith.constant 0 : i32
    %c0_i32_0 = arith.constant 0 : i32
    return %arg0, %c0_i32 : i32, i32
  }
  func.func @transform_2(%arg0: i32) -> (i32, i32) {
    %c0_i32 = arith.constant 0 : i32
    %c0_i32_0 = arith.constant 0 : i32
    %c0_i32_1 = arith.constant 0 : i32
    return %c0_i32, %c0_i32_0 : i32, i32
  }
  func.func @transform_3(%arg0: i32) -> (i32, i32) {
    %c0_i32 = arith.constant 0 : i32
    %c0_i32_0 = arith.constant 0 : i32
    %c0_i32_1 = arith.constant 0 : i32
    return %c0_i32, %c0_i32_0 : i32, i32
  }
  func.func @transform_4(%arg0: i32) -> (i32, i32) {
    %c0_i32 = arith.constant 0 : i32
    %c0_i32_0 = arith.constant 0 : i32
    %c0_i32_1 = arith.constant 0 : i32
    return %c0_i32, %c0_i32_0 : i32, i32
  }
  func.func @transform_5(%arg0: i32) -> (i32, i32) {
    %c0_i32 = arith.constant 0 : i32
    %c0_i32_0 = arith.constant 0 : i32
    %c0_i32_1 = arith.constant 0 : i32
    return %c0_i32, %c0_i32_0 : i32, i32
  }
  func.func @transform_6(%arg0: i32) -> (i32, i32) {
    %c0_i32 = arith.constant 0 : i32
    %c0_i32_0 = arith.constant 0 : i32
    %c0_i32_1 = arith.constant 0 : i32
    return %c0_i32, %c0_i32_0 : i32, i32
  }
  func.func @transform_7(%arg0: i32) -> (i32, i32) {
    %c0_i32 = arith.constant 0 : i32
    %c0_i32_0 = arith.constant 0 : i32
    %c0_i32_1 = arith.constant 0 : i32
    return %c0_i32, %c0_i32_0 : i32, i32
  }
  func.func @transform_8(%arg0: i32) -> (i32, i32) {
    %c0_i32 = arith.constant 0 : i32
    %c0_i32_0 = arith.constant 0 : i32
    %c0_i32_1 = arith.constant 0 : i32
    return %c0_i32, %c0_i32_0 : i32, i32
  }
  func.func @transform_9(%arg0: i32) -> (i32, i32) {
    %c0_i32 = arith.constant 0 : i32
    %c0_i32_0 = arith.constant 0 : i32
    return %c0_i32, %arg0 : i32, i32
  }
}

</mosaic_0001>

<llo_original>
// kernel: tpu_custom_call.1
$region0: #{tpu_custom_call.1}
  #allocation0 [shape = 'u32[]', space=smem, size = 0x4, offset = 0x4, fixed_abs, tag = 'smem constant byte address 0x4 - core index']
  #allocation1 [shape = 'u32[144,128]{1,0:T(1,128)}', space=vmem, size = 0x12000, scoped, tag = 'internal scratch']
  #allocation2 [shape = 'f32[1,1]{1,0:T(1,128)S(6)}', space=smem, size = 0x200, scoped, tag = 'scoped memory for tpu_custom_call.1']
  %s0 = inlined_call_operand.hbm [shape: f32[8,16], index: 0, kind: input, shape index: {}]
  %s1 = inlined_call_operand.hbm [shape: f32[8,8], index: 1, kind: input, shape index: {}]
  %s2 = inlined_call_operand.hbm [shape: f32[16,32], index: 2, kind: input, shape index: {}]
  %s3 = inlined_call_operand.vmem [shape: f32[8,32], index: 3, kind: input, shape index: {}]
  %s4 = inlined_call_operand.vmem [shape: f32[1,32], index: 4, kind: input, shape index: {}]
  %s5 = inlined_call_operand.hbm [shape: f32[32,32], index: 5, kind: input, shape index: {}]
  %s6 = inlined_call_operand.vmem [shape: f32[1,32], index: 6, kind: input, shape index: {}]
  %s7 = inlined_call_operand.vmem [shape: f32[1,32], index: 7, kind: input, shape index: {}]
  %s8 = inlined_call_operand.<no memory space> [shape: f32[1,1], index: 8, kind: input, shape index: {}]
  %s9 = inlined_call_operand.hbm [shape: f32[1,128], index: 9, kind: output, shape index: {}]
  %s10 = sld [smem:[#allocation0]]
  $region62: #{tpu_custom_call.1} parent=0
    _
  %s12 = ssub.s32 1, %s10
  %s13 = scalar_select 0, %s12, %s10
  %14 = sst [smem:[#allocation2]] %s8
  $region1: #{tpu_custom_call.1} parent=0
    #allocation3 [shape = 'u8[65536]{0}', space=vmem, size = 0x10000, scoped, tag = 'input window, operand 0, single buffered']
    #allocation4 [shape = 's32[1]{0}', space=sflag, size = 0x4, scoped, tag = 'scoped memory for tpu_custom_call.1']
    #allocation5 [shape = 's32[1]{0}', space=sflag, size = 0x4, scoped, tag = 'scoped memory for tpu_custom_call.1']
    #allocation6 [shape = 'u8[65536]{0}', space=vmem, size = 0x10000, scoped, tag = 'input window, operand 1, single buffered']
    #allocation7 [shape = 's32[1]{0}', space=sflag, size = 0x4, scoped, tag = 'scoped memory for tpu_custom_call.1']
    #allocation8 [shape = 'u8[8192]{0}', space=vmem, size = 0x2000, scoped, tag = 'input window, operand 2, single buffered']
    #allocation9 [shape = 'u8[16384]{0}', space=vmem, size = 0x4000, scoped, tag = 'input window, operand 5, single buffered']
    #allocation10 [shape = 's32[1]{0}', space=sflag, size = 0x4, scoped, tag = 'scoped memory for tpu_custom_call.1']
    #allocation11 [shape = 'u8[512]{0}', space=vmem, size = 0x400, scoped, tag = 'output window, operand 0, single buffered']
    %15 = vsyncpa [#allocation4], 0
    %16 = vsyncpa [#allocation7], 0
    %17 = vsyncpa [#allocation10], 0
    %18 = vsyncpa [#allocation5], 0
    // Predicated region
    $region2: #{tpu_custom_call.1} parent=1 // pred_check
      _
    $region3: #{tpu_custom_call.1} parent=1 // pred_check_branch
      %20 = sbr.rel (0) target = $region5
    $region4: #{tpu_custom_call.1} parent=1 // pred_region
      %s22 = ssub.s32 2048, 128
      %23 = vsyncadd [#allocation4], %s22
      %s24 = sshll.u32 [#allocation3], 4
      %s25 = int_to_ptr.vmem [resolvable:$true] %s24
      %30 = dma.hbm_to_vmem [thread:$0]  %s0, 128, %s25, [#allocation4], 128, 128, 8
    $region5: #{tpu_custom_call.1} parent=1 // pred_fallthru
      _
    // Predicated region
    $region6: #{tpu_custom_call.1} parent=1 // pred_check
      _
    $region7: #{tpu_custom_call.1} parent=1 // pred_check_branch
      %32 = sbr.rel (0) target = $region9
    $region8: #{tpu_custom_call.1} parent=1 // pred_region
      %s34 = ssub.s32 2048, 128
      %35 = vsyncadd [#allocation7], %s34
      %s36 = sshll.u32 [#allocation6], 4
      %s37 = int_to_ptr.vmem [resolvable:$true] %s36
      %42 = dma.hbm_to_vmem [thread:$0]  %s1, 128, %s37, [#allocation7], 128, 128, 8
    $region9: #{tpu_custom_call.1} parent=1 // pred_fallthru
      _
    // Predicated region
    $region10: #{tpu_custom_call.1} parent=1 // pred_check
      _
    $region11: #{tpu_custom_call.1} parent=1 // pred_check_branch
      %44 = sbr.rel (0) target = $region13
    $region12: #{tpu_custom_call.1} parent=1 // pred_region
      %s46 = ssub.s32 256, 256
      %47 = vsyncadd [#allocation7], %s46
      %s48 = sshll.u32 [#allocation8], 4
      %s49 = int_to_ptr.vmem [resolvable:$true] %s48
      %54 = dma.hbm_to_vmem [thread:$0]  %s2, 256, %s49, [#allocation7], 128, 128, 8
    $region13: #{tpu_custom_call.1} parent=1 // pred_fallthru
      _
    // Predicated region
    $region14: #{tpu_custom_call.1} parent=1 // pred_check
      _
    $region15: #{tpu_custom_call.1} parent=1 // pred_check_branch
      %56 = sbr.rel (0) target = $region17
    $region16: #{tpu_custom_call.1} parent=1 // pred_region
      _
    $region17: #{tpu_custom_call.1} parent=1 // pred_fallthru
      _
    // Predicated region
    $region18: #{tpu_custom_call.1} parent=1 // pred_check
      _
    $region19: #{tpu_custom_call.1} parent=1 // pred_check_branch
      %58 = sbr.rel (0) target = $region21
    $region20: #{tpu_custom_call.1} parent=1 // pred_region
      _
    $region21: #{tpu_custom_call.1} parent=1 // pred_fallthru
      _
    // Predicated region
    $region22: #{tpu_custom_call.1} parent=1 // pred_check
      _
    $region23: #{tpu_custom_call.1} parent=1 // pred_check_branch
      %60 = sbr.rel (0) target = $region25
    $region24: #{tpu_custom_call.1} parent=1 // pred_region
      %s62 = ssub.s32 512, 512
      %63 = vsyncadd [#allocation10], %s62
      %s64 = sshll.u32 [#allocation9], 4
      %s65 = int_to_ptr.vmem [resolvable:$true] %s64
      %70 = dma.hbm_to_vmem [thread:$0]  %s5, 512, %s65, [#allocation10], 128, 128, 8
    $region25: #{tpu_custom_call.1} parent=1 // pred_fallthru
      _
    // Predicated region
    $region26: #{tpu_custom_call.1} parent=1 // pred_check
      _
    $region27: #{tpu_custom_call.1} parent=1 // pred_check_branch
      %72 = sbr.rel (0) target = $region29
    $region28: #{tpu_custom_call.1} parent=1 // pred_region
      _
    $region29: #{tpu_custom_call.1} parent=1 // pred_fallthru
      _
    // Predicated region
    $region30: #{tpu_custom_call.1} parent=1 // pred_check
      _
    $region31: #{tpu_custom_call.1} parent=1 // pred_check_branch
      %74 = sbr.rel (0) target = $region33
    $region32: #{tpu_custom_call.1} parent=1 // pred_region
      _
    $region33: #{tpu_custom_call.1} parent=1 // pred_fallthru
      _
    // Predicated region
    $region34: #{tpu_custom_call.1} parent=1 // pred_check
      _
    $region35: #{tpu_custom_call.1} parent=1 // pred_check_branch
      %76 = sbr.rel (0) target = $region37
    $region36: #{tpu_custom_call.1} parent=1 // pred_region
      _
    $region37: #{tpu_custom_call.1} parent=1 // pred_fallthru
      _
    // Predicated region
    $region38: #{tpu_custom_call.1} parent=1 // pred_check
      _
    $region39: #{tpu_custom_call.1} parent=1 // pred_check_branch
      %78 = sbr.rel (0) target = $region41
    $region40: #{tpu_custom_call.1} parent=1 // pred_region
      %79 = dma.done [#allocation4], 2048
    $region41: #{tpu_custom_call.1} parent=1 // pred_fallthru
      _
    // Predicated region
    $region42: #{tpu_custom_call.1} parent=1 // pred_check
      _
    $region43: #{tpu_custom_call.1} parent=1 // pred_check_branch
      %81 = sbr.rel (0) target = $region45
    $region44: #{tpu_custom_call.1} parent=1 // pred_region
      %82 = dma.done [#allocation7], 2048
    $region45: #{tpu_custom_call.1} parent=1 // pred_fallthru
      _
    // Predicated region
    $region46: #{tpu_custom_call.1} parent=1 // pred_check
      _
    $region47: #{tpu_custom_call.1} parent=1 // pred_check_branch
      %84 = sbr.rel (0) target = $region49
    $region48: #{tpu_custom_call.1} parent=1 // pred_region
      %85 = dma.done [#allocation7], 256
    $region49: #{tpu_custom_call.1} parent=1 // pred_fallthru
      _
    // Predicated region
    $region50: #{tpu_custom_call.1} parent=1 // pred_check
      _
    $region51: #{tpu_custom_call.1} parent=1 // pred_check_branch
      %87 = sbr.rel (0) target = $region53
    $region52: #{tpu_custom_call.1} parent=1 // pred_region
      %88 = dma.done [#allocation10], 512
    $region53: #{tpu_custom_call.1} parent=1 // pred_fallthru
      _
    %v89 = vld [vmem:[#allocation3] sm:$0xff]
    %v90 = vld [vmem:[#allocation3 + $0x8] sm:$0xff]
    %v91 = vld [vmem:[#allocation3 + $0x10] sm:$0xff]
    %v92 = vld [vmem:[#allocation3 + $0x18] sm:$0xff]
    %v93 = vld [vmem:[#allocation3 + $0x20] sm:$0xff]
    %v94 = vld [vmem:[#allocation3 + $0x28] sm:$0xff]
    %v95 = vld [vmem:[#allocation3 + $0x30] sm:$0xff]
    %v96 = vld [vmem:[#allocation3 + $0x38] sm:$0xff]
    %v97 = vld [vmem:[#allocation3 + $0x40] sm:$0xff]
    %v98 = vld [vmem:[#allocation3 + $0x48] sm:$0xff]
    %v99 = vld [vmem:[#allocation3 + $0x50] sm:$0xff]
    %v100 = vld [vmem:[#allocation3 + $0x58] sm:$0xff]
    %v101 = vld [vmem:[#allocation3 + $0x60] sm:$0xff]
    %v102 = vld [vmem:[#allocation3 + $0x68] sm:$0xff]
    %v103 = vld [vmem:[#allocation3 + $0x70] sm:$0xff]
    %v104 = vld [vmem:[#allocation3 + $0x78] sm:$0xff]
    %v105 = vld [vmem:[#allocation8] sm:$0xff]
    %v106 = vld [vmem:[#allocation8 + $0x8] sm:$0xff]
    %v107 = vld [vmem:[#allocation6] sm:$0xff]
    %v108 = vld [vmem:[#allocation6 + $0x8] sm:$0xff]
    %v109 = vld [vmem:[#allocation6 + $0x10] sm:$0xff]
    %v110 = vld [vmem:[#allocation6 + $0x18] sm:$0xff]
    %v111 = vld [vmem:[#allocation6 + $0x20] sm:$0xff]
    %v112 = vld [vmem:[#allocation6 + $0x28] sm:$0xff]
    %v113 = vld [vmem:[#allocation6 + $0x30] sm:$0xff]
    %v114 = vld [vmem:[#allocation6 + $0x38] sm:$0xff]
    %v115 = vld [vmem:[#allocation6 + $0x40] sm:$0xff]
    %v116 = vld [vmem:[#allocation6 + $0x48] sm:$0xff]
    %v117 = vld [vmem:[#allocation6 + $0x50] sm:$0xff]
    %v118 = vld [vmem:[#allocation6 + $0x58] sm:$0xff]
    %v119 = vld [vmem:[#allocation6 + $0x60] sm:$0xff]
    %v120 = vld [vmem:[#allocation6 + $0x68] sm:$0xff]
    %v121 = vld [vmem:[#allocation6 + $0x70] sm:$0xff]
    %v122 = vld [vmem:[#allocation6 + $0x78] sm:$0xff]
    %v123 = vld [vmem:[%s3] sm:$0xff]
    %vm124 = vcmask 64512
    %v126 = vsel %vm124, %v107, 0
    %v129 = vsel %vm124, %v108, 0
    %v132 = vsel %vm124, %v109, 0
    %v135 = vsel %vm124, %v110, 0
    %v138 = vsel %vm124, %v111, 0
    %v141 = vsel %vm124, %v112, 0
    %v144 = vsel %vm124, %v113, 0
    %v147 = vsel %vm124, %v114, 0
    %v150 = vsel %vm124, %v115, 0
    %v153 = vsel %vm124, %v116, 0
    %v156 = vsel %vm124, %v117, 0
    %v159 = vsel %vm124, %v118, 0
    %v162 = vsel %vm124, %v119, 0
    %v165 = vsel %vm124, %v120, 0
    %v168 = vsel %vm124, %v121, 0
    %v171 = vsel %vm124, %v122, 0
    %173 = vmatprep.subr.mxu0 0.0
    %174 = vmatpush1.msra.mxu0 %v123
    %175 = vmatprep.subr.mxu0 0.0
    %176 = vmatpush1.msra.mxu0 0.0
    %177 = vmatprep.subr.mxu0 0.0
    %178 = vmatpush1.msra.mxu0 0.0
    %179 = vmatprep.subr.mxu0 0.0
    %180 = vmatpush1.msra.mxu0 0.0
    %181 = vmatprep.subr.mxu0 0.0
    %182 = vmatpush1.msra.mxu0 0.0
    %183 = vmatprep.subr.mxu0 0.0
    %184 = vmatpush1.msra.mxu0 0.0
    %185 = vmatprep.subr.mxu0 0.0
    %186 = vmatpush1.msra.mxu0 0.0
    %187 = vmatprep.subr.mxu0 0.0
    %188 = vmatpush1.msra.mxu0 0.0
    %189 = vmatprep.subr.mxu0 0.0
    %190 = vmatpush1.msra.mxu0 0.0
    %191 = vmatprep.subr.mxu0 0.0
    %192 = vmatpush1.msra.mxu0 0.0
    %193 = vmatprep.subr.mxu0 0.0
    %194 = vmatpush1.msra.mxu0 0.0
    %195 = vmatprep.subr.mxu0 0.0
    %196 = vmatpush1.msra.mxu0 0.0
    %197 = vmatprep.subr.mxu0 0.0
    %198 = vmatpush1.msra.mxu0 0.0
    %199 = vmatprep.subr.mxu0 0.0
    %200 = vmatpush1.msra.mxu0 0.0
    %201 = vmatprep.subr.mxu0 0.0
    %202 = vmatpush1.msra.mxu0 0.0
    %203 = vmatprep.subr.mxu0 0.0
    %204 = vmatpush1.msra.mxu0 0.0
    %205 = vmatprep.subr.mxu0 0.0
    %206 = vmatpush1.msra.mxu0 0.0
    %207 = vmatprep.subr.mxu0 0.0
    %208 = vmatpush1.msra.mxu0 0.0
    %209 = vmatprep.subr.mxu0 0.0
    %210 = vmatpush1.msra.mxu0 0.0
    %211 = vmatprep.subr.mxu0 0.0
    %212 = vmatpush1.msra.mxu0 0.0
    %213 = vmatprep.subr.mxu0 0.0
    %214 = vmatpush1.msra.mxu0 0.0
    %215 = vmatprep.subr.mxu0 0.0
    %216 = vmatpush1.msra.mxu0 0.0
    %217 = vmatprep.subr.mxu0 0.0
    %218 = vmatpush1.msra.mxu0 0.0
    %219 = vmatprep.subr.mxu0 0.0
    %220 = vmatpush1.msra.mxu0 0.0
    %221 = vmatprep.subr.mxu0 0.0
    %222 = vmatpush1.msra.mxu0 0.0
    %223 = vmatprep.subr.mxu0 0.0
    %224 = vmatpush1.msra.mxu0 0.0
    %225 = vmatprep.subr.mxu0 0.0
    %226 = vmatpush1.msra.mxu0 0.0
    %227 = vmatprep.subr.mxu0 0.0
    %228 = vmatpush1.msra.mxu0 0.0
    %229 = vmatprep.subr.mxu0 0.0
    %230 = vmatpush1.msra.mxu0 0.0
    %231 = vmatprep.subr.mxu0 0.0
    %232 = vmatpush1.msra.mxu0 0.0
    %233 = vmatprep.subr.mxu0 0.0
    %234 = vmatpush1.msra.mxu0 0.0
    %235 = vmatprep.subr.mxu0 0.0
    %236 = vmatpush1.msra.mxu0 0.0
    %237 = vmatprep.mubr.f32.mxu0 0.0
    %238 = vmatmul.mubr.f32.gmra.mrb[0].mxu0 %v126
    %v239 = vpop.f32.mrb[0].mxu0
    %v240 = vadd.f32 0.0, %v239
    %v241 = vpop.f32.mrb[0].mxu0
    %242 = vmatprep.mubr.f32.mxu0 0.0
    %243 = vmatmul.mubr.f32.gmra.mrb[0].mxu0 %v129
    %v244 = vpop.f32.mrb[0].mxu0
    %v245 = vadd.f32 0.0, %v244
    %v246 = vpop.f32.mrb[0].mxu0
    %247 = vmatprep.mubr.f32.mxu0 0.0
    %248 = vmatmul.mubr.f32.gmra.mrb[0].mxu0 %v132
    %v249 = vpop.f32.mrb[0].mxu0
    %v250 = vadd.f32 0.0, %v249
    %v251 = vpop.f32.mrb[0].mxu0
    %252 = vmatprep.mubr.f32.mxu0 0.0
    %253 = vmatmul.mubr.f32.gmra.mrb[0].mxu0 %v135
    %v254 = vpop.f32.mrb[0].mxu0
    %v255 = vadd.f32 0.0, %v254
    %v256 = vpop.f32.mrb[0].mxu0
    %257 = vmatprep.mubr.f32.mxu0 0.0
    %258 = vmatmul.mubr.f32.gmra.mrb[0].mxu0 %v138
    %v259 = vpop.f32.mrb[0].mxu0
    %v260 = vadd.f32 0.0, %v259
    %v261 = vpop.f32.mrb[0].mxu0
    %262 = vmatprep.mubr.f32.mxu0 0.0
    %263 = vmatmul.mubr.f32.gmra.mrb[0].mxu0 %v141
    %v264 = vpop.f32.mrb[0].mxu0
    %v265 = vadd.f32 0.0, %v264
    %v266 = vpop.f32.mrb[0].mxu0
    %267 = vmatprep.mubr.f32.mxu0 0.0
    %268 = vmatmul.mubr.f32.gmra.mrb[0].mxu0 %v144
    %v269 = vpop.f32.mrb[0].mxu0
    %v270 = vadd.f32 0.0, %v269
    %v271 = vpop.f32.mrb[0].mxu0
    %272 = vmatprep.mubr.f32.mxu0 0.0
    %273 = vmatmul.mubr.f32.gmra.mrb[0].mxu0 %v147
    %v274 = vpop.f32.mrb[0].mxu0
    %v275 = vadd.f32 0.0, %v274
    %v276 = vpop.f32.mrb[0].mxu0
    %277 = vmatprep.mubr.f32.mxu0 0.0
    %278 = vmatmul.mubr.f32.gmra.mrb[0].mxu0 %v150
    %v279 = vpop.f32.mrb[0].mxu0
    %v280 = vadd.f32 0.0, %v279
    %v281 = vpop.f32.mrb[0].mxu0
    %282 = vmatprep.mubr.f32.mxu0 0.0
    %283 = vmatmul.mubr.f32.gmra.mrb[0].mxu0 %v153
    %v284 = vpop.f32.mrb[0].mxu0
    %v285 = vadd.f32 0.0, %v284
    %v286 = vpop.f32.mrb[0].mxu0
    %287 = vmatprep.mubr.f32.mxu0 0.0
    %288 = vmatmul.mubr.f32.gmra.mrb[0].mxu0 %v156
    %v289 = vpop.f32.mrb[0].mxu0
    %v290 = vadd.f32 0.0, %v289
    %v291 = vpop.f32.mrb[0].mxu0
    %292 = vmatprep.mubr.f32.mxu0 0.0
    %293 = vmatmul.mubr.f32.gmra.mrb[0].mxu0 %v159
    %v294 = vpop.f32.mrb[0].mxu0
    %v295 = vadd.f32 0.0, %v294
    %v296 = vpop.f32.mrb[0].mxu0
    %297 = vmatprep.mubr.f32.mxu0 0.0
    %298 = vmatmul.mubr.f32.gmra.mrb[0].mxu0 %v162
    %v299 = vpop.f32.mrb[0].mxu0
    %v300 = vadd.f32 0.0, %v299
    %v301 = vpop.f32.mrb[0].mxu0
    %302 = vmatprep.mubr.f32.mxu0 0.0
    %303 = vmatmul.mubr.f32.gmra.mrb[0].mxu0 %v165
    %v304 = vpop.f32.mrb[0].mxu0
    %v305 = vadd.f32 0.0, %v304
    %v306 = vpop.f32.mrb[0].mxu0
    %307 = vmatprep.mubr.f32.mxu0 0.0
    %308 = vmatmul.mubr.f32.gmra.mrb[0].mxu0 %v168
    %v309 = vpop.f32.mrb[0].mxu0
    %v310 = vadd.f32 0.0, %v309
    %v311 = vpop.f32.mrb[0].mxu0
    %312 = vmatprep.mubr.f32.mxu0 0.0
    %313 = vmatmul.mubr.f32.gmra.mrb[0].mxu0 %v171
    %v314 = vpop.f32.mrb[0].mxu0
    %v315 = vadd.f32 0.0, %v314
    %v316 = vpop.f32.mrb[0].mxu0
    %317 = vdwg.mxu0
    %vm318 = vcmask 130048
    %v320 = vsel %vm318, %v89, 0
    %v323 = vsel %vm318, %v90, 0
    %v326 = vsel %vm318, %v91, 0
    %v329 = vsel %vm318, %v92, 0
    %v332 = vsel %vm318, %v93, 0
    %v335 = vsel %vm318, %v94, 0
    %v338 = vsel %vm318, %v95, 0
    %v341 = vsel %vm318, %v96, 0
    %v344 = vsel %vm318, %v97, 0
    %v347 = vsel %vm318, %v98, 0
    %v350 = vsel %vm318, %v99, 0
    %v353 = vsel %vm318, %v100, 0
    %v356 = vsel %vm318, %v101, 0
    %v359 = vsel %vm318, %v102, 0
    %v362 = vsel %vm318, %v103, 0
    %v365 = vsel %vm318, %v104, 0
    %367 = vmatprep.subr.mxu0 0.0
    %368 = vmatpush1.msra.mxu0 %v105
    %369 = vmatprep.subr.mxu0 0.0
    %370 = vmatpush1.msra.mxu0 %v106
    %371 = vmatprep.subr.mxu0 0.0
    %372 = vmatpush1.msra.mxu0 0.0
    %373 = vmatprep.subr.mxu0 0.0
    %374 = vmatpush1.msra.mxu0 0.0
    %375 = vmatprep.subr.mxu0 0.0
    %376 = vmatpush1.msra.mxu0 0.0
    %377 = vmatprep.subr.mxu0 0.0
    %378 = vmatpush1.msra.mxu0 0.0
    %379 = vmatprep.subr.mxu0 0.0
    %380 = vmatpush1.msra.mxu0 0.0
    %381 = vmatprep.subr.mxu0 0.0
    %382 = vmatpush1.msra.mxu0 0.0
    %383 = vmatprep.subr.mxu0 0.0
    %384 = vmatpush1.msra.mxu0 0.0
    %385 = vmatprep.subr.mxu0 0.0
    %386 = vmatpush1.msra.mxu0 0.0
    %387 = vmatprep.subr.mxu0 0.0
    %388 = vmatpush1.msra.mxu0 0.0
    %389 = vmatprep.subr.mxu0 0.0
    %390 = vmatpush1.msra.mxu0 0.0
    %391 = vmatprep.subr.mxu0 0.0
    %392 = vmatpush1.msra.mxu0 0.0
    %393 = vmatprep.subr.mxu0 0.0
    %394 = vmatpush1.msra.mxu0 0.0
    %395 = vmatprep.subr.mxu0 0.0
    %396 = vmatpush1.msra.mxu0 0.0
    %397 = vmatprep.subr.mxu0 0.0
    %398 = vmatpush1.msra.mxu0 0.0
    %399 = vmatprep.subr.mxu0 0.0
    %400 = vmatpush1.msra.mxu0 0.0
    %401 = vmatprep.subr.mxu0 0.0
    %402 = vmatpush1.msra.mxu0 0.0
    %403 = vmatprep.subr.mxu0 0.0
    %404 = vmatpush1.msra.mxu0 0.0
    %405 = vmatprep.subr.mxu0 0.0
    %406 = vmatpush1.msra.mxu0 0.0
    %407 = vmatprep.subr.mxu0 0.0
    %408 = vmatpush1.msra.mxu0 0.0
    %409 = vmatprep.subr.mxu0 0.0
    %410 = vmatpush1.msra.mxu0 0.0
    %411 = vmatprep.subr.mxu0 0.0
    %412 = vmatpush1.msra.mxu0 0.0
    %413 = vmatprep.subr.mxu0 0.0
    %414 = vmatpush1.msra.mxu0 0.0
    %415 = vmatprep.subr.mxu0 0.0
    %416 = vmatpush1.msra.mxu0 0.0
    %417 = vmatprep.subr.mxu0 0.0
    %418 = vmatpush1.msra.mxu0 0.0
    %419 = vmatprep.subr.mxu0 0.0
    %420 = vmatpush1.msra.mxu0 0.0
    %421 = vmatprep.subr.mxu0 0.0
    %422 = vmatpush1.msra.mxu0 0.0
    %423 = vmatprep.subr.mxu0 0.0
    %424 = vmatpush1.msra.mxu0 0.0
    %425 = vmatprep.subr.mxu0 0.0
    %426 = vmatpush1.msra.mxu0 0.0
    %427 = vmatprep.subr.mxu0 0.0
    %428 = vmatpush1.msra.mxu0 0.0
    %429 = vmatprep.subr.mxu0 0.0
    %430 = vmatpush1.msra.mxu0 0.0
    %431 = vmatprep.mubr.f32.mxu0 0.0
    %432 = vmatmul.mubr.f32.gmra.mrb[0].mxu0 %v320
    %v433 = vpop.f32.mrb[0].mxu0
    %v434 = vadd.f32 %v240, %v433
    %v435 = vpop.f32.mrb[0].mxu0
    %436 = vmatprep.mubr.f32.mxu0 0.0
    %437 = vmatmul.mubr.f32.gmra.mrb[0].mxu0 %v323
    %v438 = vpop.f32.mrb[0].mxu0
    %v439 = vadd.f32 %v245, %v438
    %v440 = vpop.f32.mrb[0].mxu0
    %441 = vmatprep.mubr.f32.mxu0 0.0
    %442 = vmatmul.mubr.f32.gmra.mrb[0].mxu0 %v326
    %v443 = vpop.f32.mrb[0].mxu0
    %v444 = vadd.f32 %v250, %v443
    %v445 = vpop.f32.mrb[0].mxu0
    %446 = vmatprep.mubr.f32.mxu0 0.0
    %447 = vmatmul.mubr.f32.gmra.mrb[0].mxu0 %v329
    %v448 = vpop.f32.mrb[0].mxu0
    %v449 = vadd.f32 %v255, %v448
    %v450 = vpop.f32.mrb[0].mxu0
    %451 = vmatprep.mubr.f32.mxu0 0.0
    %452 = vmatmul.mubr.f32.gmra.mrb[0].mxu0 %v332
    %v453 = vpop.f32.mrb[0].mxu0
    %v454 = vadd.f32 %v260, %v453
    %v455 = vpop.f32.mrb[0].mxu0
    %456 = vmatprep.mubr.f32.mxu0 0.0
    %457 = vmatmul.mubr.f32.gmra.mrb[0].mxu0 %v335
    %v458 = vpop.f32.mrb[0].mxu0
    %v459 = vadd.f32 %v265, %v458
    %v460 = vpop.f32.mrb[0].mxu0
    %461 = vmatprep.mubr.f32.mxu0 0.0
    %462 = vmatmul.mubr.f32.gmra.mrb[0].mxu0 %v338
    %v463 = vpop.f32.mrb[0].mxu0
    %v464 = vadd.f32 %v270, %v463
    %v465 = vpop.f32.mrb[0].mxu0
    %466 = vmatprep.mubr.f32.mxu0 0.0
    %467 = vmatmul.mubr.f32.gmra.mrb[0].mxu0 %v341
    %v468 = vpop.f32.mrb[0].mxu0
    %v469 = vadd.f32 %v275, %v468
    %v470 = vpop.f32.mrb[0].mxu0
    %471 = vmatprep.mubr.f32.mxu0 0.0
    %472 = vmatmul.mubr.f32.gmra.mrb[0].mxu0 %v344
    %v473 = vpop.f32.mrb[0].mxu0
    %v474 = vadd.f32 %v280, %v473
    %v475 = vpop.f32.mrb[0].mxu0
    %476 = vmatprep.mubr.f32.mxu0 0.0
    %477 = vmatmul.mubr.f32.gmra.mrb[0].mxu0 %v347
    %v478 = vpop.f32.mrb[0].mxu0
    %v479 = vadd.f32 %v285, %v478
    %v480 = vpop.f32.mrb[0].mxu0
    %481 = vmatprep.mubr.f32.mxu0 0.0
    %482 = vmatmul.mubr.f32.gmra.mrb[0].mxu0 %v350
    %v483 = vpop.f32.mrb[0].mxu0
    %v484 = vadd.f32 %v290, %v483
    %v485 = vpop.f32.mrb[0].mxu0
    %486 = vmatprep.mubr.f32.mxu0 0.0
    %487 = vmatmul.mubr.f32.gmra.mrb[0].mxu0 %v353
    %v488 = vpop.f32.mrb[0].mxu0
    %v489 = vadd.f32 %v295, %v488
    %v490 = vpop.f32.mrb[0].mxu0
    %491 = vmatprep.mubr.f32.mxu0 0.0
    %492 = vmatmul.mubr.f32.gmra.mrb[0].mxu0 %v356
    %v493 = vpop.f32.mrb[0].mxu0
    %v494 = vadd.f32 %v300, %v493
    %v495 = vpop.f32.mrb[0].mxu0
    %496 = vmatprep.mubr.f32.mxu0 0.0
    %497 = vmatmul.mubr.f32.gmra.mrb[0].mxu0 %v359
    %v498 = vpop.f32.mrb[0].mxu0
    %v499 = vadd.f32 %v305, %v498
    %v500 = vpop.f32.mrb[0].mxu0
    %501 = vmatprep.mubr.f32.mxu0 0.0
    %502 = vmatmul.mubr.f32.gmra.mrb[0].mxu0 %v362
    %v503 = vpop.f32.mrb[0].mxu0
    %v504 = vadd.f32 %v310, %v503
    %v505 = vpop.f32.mrb[0].mxu0
    %506 = vmatprep.mubr.f32.mxu0 0.0
    %507 = vmatmul.mubr.f32.gmra.mrb[0].mxu0 %v365
    %v508 = vpop.f32.mrb[0].mxu0
    %v509 = vadd.f32 %v315, %v508
    %v510 = vpop.f32.mrb[0].mxu0
    %511 = vdwg.mxu0
    %v512 = vld [vmem:[%s4] sm:$0x1]
    %v514 = vlaneseq
    %v515 = vshrl.u32 %v514, 7
    %v516 = vsub.s32 0, %v515
    %v517 = vrot.slane %v512, %v516
    %v519 = vadd.f32 %v434, %v517
    %v520 = vadd.f32 %v439, %v517
    %v521 = vadd.f32 %v444, %v517
    %v522 = vadd.f32 %v449, %v517
    %v523 = vadd.f32 %v454, %v517
    %v524 = vadd.f32 %v459, %v517
    %v525 = vadd.f32 %v464, %v517
    %v526 = vadd.f32 %v469, %v517
    %v527 = vadd.f32 %v474, %v517
    %v528 = vadd.f32 %v479, %v517
    %v529 = vadd.f32 %v484, %v517
    %v530 = vadd.f32 %v489, %v517
    %v531 = vadd.f32 %v494, %v517
    %v532 = vadd.f32 %v499, %v517
    %v533 = vadd.f32 %v504, %v517
    %v534 = vadd.f32 %v509, %v517
    %v535 = vmax.f32 %v519, 0.0
    %v536 = vmax.f32 %v520, 0.0
    %v537 = vmax.f32 %v521, 0.0
    %v538 = vmax.f32 %v522, 0.0
    %v539 = vmax.f32 %v523, 0.0
    %v540 = vmax.f32 %v524, 0.0
    %v541 = vmax.f32 %v525, 0.0
    %v542 = vmax.f32 %v526, 0.0
    %v543 = vmax.f32 %v527, 0.0
    %v544 = vmax.f32 %v528, 0.0
    %v545 = vmax.f32 %v529, 0.0
    %v546 = vmax.f32 %v530, 0.0
    %v547 = vmax.f32 %v531, 0.0
    %v548 = vmax.f32 %v532, 0.0
    %v549 = vmax.f32 %v533, 0.0
    %v550 = vmax.f32 %v534, 0.0
    %v551 = vld [vmem:[#allocation9] sm:$0xff]
    %v552 = vld [vmem:[#allocation9 + $0x8] sm:$0xff]
    %v553 = vld [vmem:[#allocation9 + $0x10] sm:$0xff]
    %v554 = vld [vmem:[#allocation9 + $0x18] sm:$0xff]
    %v555 = vld [vmem:[%s6] sm:$0x1]
    %v557 = vlaneseq
    %v558 = vshrl.u32 %v557, 7
    %v559 = vsub.s32 0, %v558
    %v560 = vrot.slane %v555, %v559
    %vm562 = vcmask 261120
    %v564 = vsel %vm562, %v535, 0
    %v567 = vsel %vm562, %v536, 0
    %v570 = vsel %vm562, %v537, 0
    %v573 = vsel %vm562, %v538, 0
    %v576 = vsel %vm562, %v539, 0
    %v579 = vsel %vm562, %v540, 0
    %v582 = vsel %vm562, %v541, 0
    %v585 = vsel %vm562, %v542, 0
    %v588 = vsel %vm562, %v543, 0
    %v591 = vsel %vm562, %v544, 0
    %v594 = vsel %vm562, %v545, 0
    %v597 = vsel %vm562, %v546, 0
    %v600 = vsel %vm562, %v547, 0
    %v603 = vsel %vm562, %v548, 0
    %v606 = vsel %vm562, %v549, 0
    %v609 = vsel %vm562, %v550, 0
    %611 = vmatprep.subr.mxu0 0.0
    %612 = vmatpush1.msra.mxu0 %v551
    %613 = vmatprep.subr.mxu0 0.0
    %614 = vmatpush1.msra.mxu0 %v552
    %615 = vmatprep.subr.mxu0 0.0
    %616 = vmatpush1.msra.mxu0 %v553
    %617 = vmatprep.subr.mxu0 0.0
    %618 = vmatpush1.msra.mxu0 %v554
    %619 = vmatprep.subr.mxu0 0.0
    %620 = vmatpush1.msra.mxu0 0.0
    %621 = vmatprep.subr.mxu0 0.0
    %622 = vmatpush1.msra.mxu0 0.0
    %623 = vmatprep.subr.mxu0 0.0
    %624 = vmatpush1.msra.mxu0 0.0
    %625 = vmatprep.subr.mxu0 0.0
    %626 = vmatpush1.msra.mxu0 0.0
    %627 = vmatprep.subr.mxu0 0.0
    %628 = vmatpush1.msra.mxu0 0.0
    %629 = vmatprep.subr.mxu0 0.0
    %630 = vmatpush1.msra.mxu0 0.0
    %631 = vmatprep.subr.mxu0 0.0
    %632 = vmatpush1.msra.mxu0 0.0
    %633 = vmatprep.subr.mxu0 0.0
    %634 = vmatpush1.msra.mxu0 0.0
    %635 = vmatprep.subr.mxu0 0.0
    %636 = vmatpush1.msra.mxu0 0.0
    %637 = vmatprep.subr.mxu0 0.0
    %638 = vmatpush1.msra.mxu0 0.0
    %639 = vmatprep.subr.mxu0 0.0
    %640 = vmatpush1.msra.mxu0 0.0
    %641 = vmatprep.subr.mxu0 0.0
    %642 = vmatpush1.msra.mxu0 0.0
    %643 = vmatprep.subr.mxu0 0.0
    %644 = vmatpush1.msra.mxu0 0.0
    %645 = vmatprep.subr.mxu0 0.0
    %646 = vmatpush1.msra.mxu0 0.0
    %647 = vmatprep.subr.mxu0 0.0
    %648 = vmatpush1.msra.mxu0 0.0
    %649 = vmatprep.subr.mxu0 0.0
    %650 = vmatpush1.msra.mxu0 0.0
    %651 = vmatprep.subr.mxu0 0.0
    %652 = vmatpush1.msra.mxu0 0.0
    %653 = vmatprep.subr.mxu0 0.0
    %654 = vmatpush1.msra.mxu0 0.0
    %655 = vmatprep.subr.mxu0 0.0
    %656 = vmatpush1.msra.mxu0 0.0
    %657 = vmatprep.subr.mxu0 0.0
    %658 = vmatpush1.msra.mxu0 0.0
    %659 = vmatprep.subr.mxu0 0.0
    %660 = vmatpush1.msra.mxu0 0.0
    %661 = vmatprep.subr.mxu0 0.0
    %662 = vmatpush1.msra.mxu0 0.0
    %663 = vmatprep.subr.mxu0 0.0
    %664 = vmatpush1.msra.mxu0 0.0
    %665 = vmatprep.subr.mxu0 0.0
    %666 = vmatpush1.msra.mxu0 0.0
    %667 = vmatprep.subr.mxu0 0.0
    %668 = vmatpush1.msra.mxu0 0.0
    %669 = vmatprep.subr.mxu0 0.0
    %670 = vmatpush1.msra.mxu0 0.0
    %671 = vmatprep.subr.mxu0 0.0
    %672 = vmatpush1.msra.mxu0 0.0
    %673 = vmatprep.subr.mxu0 0.0
    %674 = vmatpush1.msra.mxu0 0.0
    %675 = vmatprep.mubr.f32.mxu0 0.0
    %676 = vmatmul.mubr.f32.gmra.mrb[0].mxu0 %v564
    %v677 = vpop.f32.mrb[0].mxu0
    %v678 = vadd.f32 %v560, %v677
    %v679 = vpop.f32.mrb[0].mxu0
    %680 = vmatprep.mubr.f32.mxu0 0.0
    %681 = vmatmul.mubr.f32.gmra.mrb[0].mxu0 %v567
    %v682 = vpop.f32.mrb[0].mxu0
    %v683 = vadd.f32 %v560, %v682
    %v684 = vpop.f32.mrb[0].mxu0
    %685 = vmatprep.mubr.f32.mxu0 0.0
    %686 = vmatmul.mubr.f32.gmra.mrb[0].mxu0 %v570
    %v687 = vpop.f32.mrb[0].mxu0
    %v688 = vadd.f32 %v560, %v687
    %v689 = vpop.f32.mrb[0].mxu0
    %690 = vmatprep.mubr.f32.mxu0 0.0
    %691 = vmatmul.mubr.f32.gmra.mrb[0].mxu0 %v573
    %v692 = vpop.f32.mrb[0].mxu0
    %v693 = vadd.f32 %v560, %v692
    %v694 = vpop.f32.mrb[0].mxu0
    %695 = vmatprep.mubr.f32.mxu0 0.0
    %696 = vmatmul.mubr.f32.gmra.mrb[0].mxu0 %v576
    %v697 = vpop.f32.mrb[0].mxu0
    %v698 = vadd.f32 %v560, %v697
    %v699 = vpop.f32.mrb[0].mxu0
    %700 = vmatprep.mubr.f32.mxu0 0.0
    %701 = vmatmul.mubr.f32.gmra.mrb[0].mxu0 %v579
    %v702 = vpop.f32.mrb[0].mxu0
    %v703 = vadd.f32 %v560, %v702
    %v704 = vpop.f32.mrb[0].mxu0
    %705 = vmatprep.mubr.f32.mxu0 0.0
    %706 = vmatmul.mubr.f32.gmra.mrb[0].mxu0 %v582
    %v707 = vpop.f32.mrb[0].mxu0
    %v708 = vadd.f32 %v560, %v707
    %v709 = vpop.f32.mrb[0].mxu0
    %710 = vmatprep.mubr.f32.mxu0 0.0
    %711 = vmatmul.mubr.f32.gmra.mrb[0].mxu0 %v585
    %v712 = vpop.f32.mrb[0].mxu0
    %v713 = vadd.f32 %v560, %v712
    %v714 = vpop.f32.mrb[0].mxu0
    %715 = vmatprep.mubr.f32.mxu0 0.0
    %716 = vmatmul.mubr.f32.gmra.mrb[0].mxu0 %v588
    %v717 = vpop.f32.mrb[0].mxu0
    %v718 = vadd.f32 %v560, %v717
    %v719 = vpop.f32.mrb[0].mxu0
    %720 = vmatprep.mubr.f32.mxu0 0.0
    %721 = vmatmul.mubr.f32.gmra.mrb[0].mxu0 %v591
    %v722 = vpop.f32.mrb[0].mxu0
    %v723 = vadd.f32 %v560, %v722
    %v724 = vpop.f32.mrb[0].mxu0
    %725 = vmatprep.mubr.f32.mxu0 0.0
    %726 = vmatmul.mubr.f32.gmra.mrb[0].mxu0 %v594
    %v727 = vpop.f32.mrb[0].mxu0
    %v728 = vadd.f32 %v560, %v727
    %v729 = vpop.f32.mrb[0].mxu0
    %730 = vmatprep.mubr.f32.mxu0 0.0
    %731 = vmatmul.mubr.f32.gmra.mrb[0].mxu0 %v597
    %v732 = vpop.f32.mrb[0].mxu0
    %v733 = vadd.f32 %v560, %v732
    %v734 = vpop.f32.mrb[0].mxu0
    %735 = vmatprep.mubr.f32.mxu0 0.0
    %736 = vmatmul.mubr.f32.gmra.mrb[0].mxu0 %v600
    %v737 = vpop.f32.mrb[0].mxu0
    %v738 = vadd.f32 %v560, %v737
    %v739 = vpop.f32.mrb[0].mxu0
    %740 = vmatprep.mubr.f32.mxu0 0.0
    %741 = vmatmul.mubr.f32.gmra.mrb[0].mxu0 %v603
    %v742 = vpop.f32.mrb[0].mxu0
    %v743 = vadd.f32 %v560, %v742
    %v744 = vpop.f32.mrb[0].mxu0
    %745 = vmatprep.mubr.f32.mxu0 0.0
    %746 = vmatmul.mubr.f32.gmra.mrb[0].mxu0 %v606
    %v747 = vpop.f32.mrb[0].mxu0
    %v748 = vadd.f32 %v560, %v747
    %v749 = vpop.f32.mrb[0].mxu0
    %750 = vmatprep.mubr.f32.mxu0 0.0
    %751 = vmatmul.mubr.f32.gmra.mrb[0].mxu0 %v609
    %v752 = vpop.f32.mrb[0].mxu0
    %v753 = vadd.f32 %v560, %v752
    %v754 = vpop.f32.mrb[0].mxu0
    %755 = vdwg.mxu0
    %v756 = vmax.f32 %v678, 0.0
    %v757 = vmax.f32 %v683, 0.0
    %v758 = vmax.f32 %v688, 0.0
    %v759 = vmax.f32 %v693, 0.0
    %v760 = vmax.f32 %v698, 0.0
    %v761 = vmax.f32 %v703, 0.0
    %v762 = vmax.f32 %v708, 0.0
    %v763 = vmax.f32 %v713, 0.0
    %v764 = vmax.f32 %v718, 0.0
    %v765 = vmax.f32 %v723, 0.0
    %v766 = vmax.f32 %v728, 0.0
    %v767 = vmax.f32 %v733, 0.0
    %v768 = vmax.f32 %v738, 0.0
    %v769 = vmax.f32 %v743, 0.0
    %v770 = vmax.f32 %v748, 0.0
    %v771 = vmax.f32 %v753, 0.0
    %v772 = vld [vmem:[%s7] sm:$0x1]
    %v774 = vlaneseq
    %v775 = vshrl.u32 %v774, 7
    %v776 = vsub.s32 0, %v775
    %v777 = vrot.slane %v772, %v776
    %v779 = vmul.f32 %v756, %v777
    %v780 = vmul.f32 %v757, %v777
    %v781 = vmul.f32 %v758, %v777
    %v782 = vmul.f32 %v759, %v777
    %v783 = vmul.f32 %v760, %v777
    %v784 = vmul.f32 %v761, %v777
    %v785 = vmul.f32 %v762, %v777
    %v786 = vmul.f32 %v763, %v777
    %v787 = vmul.f32 %v764, %v777
    %v788 = vmul.f32 %v765, %v777
    %v789 = vmul.f32 %v766, %v777
    %v790 = vmul.f32 %v767, %v777
    %v791 = vmul.f32 %v768, %v777
    %v792 = vmul.f32 %v769, %v777
    %v793 = vmul.f32 %v770, %v777
    %v794 = vmul.f32 %v771, %v777
    %v795 = vsel %vm562, %v779, 0.0
    %796 = vadd.xlane.f32.xlu0 %v795
    %v797 = vpop.xlane.xlu0 %796
    %v798 = vsel %vm562, %v780, 0.0
    %799 = vadd.xlane.f32.xlu0 %v798
    %v800 = vpop.xlane.xlu0 %799
    %v801 = vsel %vm562, %v781, 0.0
    %802 = vadd.xlane.f32.xlu0 %v801
    %v803 = vpop.xlane.xlu0 %802
    %v804 = vsel %vm562, %v782, 0.0
    %805 = vadd.xlane.f32.xlu0 %v804
    %v806 = vpop.xlane.xlu0 %805
    %v807 = vsel %vm562, %v783, 0.0
    %808 = vadd.xlane.f32.xlu0 %v807
    %v809 = vpop.xlane.xlu0 %808
    %v810 = vsel %vm562, %v784, 0.0
    %811 = vadd.xlane.f32.xlu0 %v810
    %v812 = vpop.xlane.xlu0 %811
    %v813 = vsel %vm562, %v785, 0.0
    %814 = vadd.xlane.f32.xlu0 %v813
    %v815 = vpop.xlane.xlu0 %814
    %v816 = vsel %vm562, %v786, 0.0
    %817 = vadd.xlane.f32.xlu0 %v816
    %v818 = vpop.xlane.xlu0 %817
    %v819 = vsel %vm562, %v787, 0.0
    %820 = vadd.xlane.f32.xlu0 %v819
    %v821 = vpop.xlane.xlu0 %820
    %v822 = vsel %vm562, %v788, 0.0
    %823 = vadd.xlane.f32.xlu0 %v822
    %v824 = vpop.xlane.xlu0 %823
    %v825 = vsel %vm562, %v789, 0.0
    %826 = vadd.xlane.f32.xlu0 %v825
    %v827 = vpop.xlane.xlu0 %826
    %v828 = vsel %vm562, %v790, 0.0
    %829 = vadd.xlane.f32.xlu0 %v828
    %v830 = vpop.xlane.xlu0 %829
    %v831 = vsel %vm562, %v791, 0.0
    %832 = vadd.xlane.f32.xlu0 %v831
    %v833 = vpop.xlane.xlu0 %832
    %v834 = vsel %vm562, %v792, 0.0
    %835 = vadd.xlane.f32.xlu0 %v834
    %v836 = vpop.xlane.xlu0 %835
    %v837 = vsel %vm562, %v793, 0.0
    %838 = vadd.xlane.f32.xlu0 %v837
    %v839 = vpop.xlane.xlu0 %838
    %v840 = vsel %vm562, %v794, 0.0
    %841 = vadd.xlane.f32.xlu0 %v840
    %v842 = vpop.xlane.xlu0 %841
    %s843 = sld [smem:[#allocation2]]
    %v844 = vstv %s843
    %v845 = vadd.f32 %v797, %v844
    %v846 = vadd.f32 %v800, %v844
    %v847 = vadd.f32 %v803, %v844
    %v848 = vadd.f32 %v806, %v844
    %v849 = vadd.f32 %v809, %v844
    %v850 = vadd.f32 %v812, %v844
    %v851 = vadd.f32 %v815, %v844
    %v852 = vadd.f32 %v818, %v844
    %v853 = vadd.f32 %v821, %v844
    %v854 = vadd.f32 %v824, %v844
    %v855 = vadd.f32 %v827, %v844
    %v856 = vadd.f32 %v830, %v844
    %v857 = vadd.f32 %v833, %v844
    %v858 = vadd.f32 %v836, %v844
    %v859 = vadd.f32 %v839, %v844
    %v860 = vadd.f32 %v842, %v844
    %v877 = vlaneseq
    %v878 = vand.u32 %v877, 127
    %v879 = vlaneseq
    %v880 = vshrl.u32 %v879, 7
    %v881 = vsub.s32 %v878, %v880
    %v882 = vrot.slane %v845, %v881
    %v883 = vadd.s32 %v878, 4294967288
    %v884 = vlaneseq
    %v885 = vshrl.u32 %v884, 7
    %v886 = vsub.s32 %v883, %v885
    %v887 = vrot.slane %v846, %v886
    %vm888 = vcmask 130112
    %v889 = vsel %vm888, %v887, %v882
    %v890 = vadd.s32 %v878, 4294967280
    %v891 = vlaneseq
    %v892 = vshrl.u32 %v891, 7
    %v893 = vsub.s32 %v890, %v892
    %v894 = vrot.slane %v847, %v893
    %vm895 = vcmask 195712
    %v896 = vsel %vm895, %v894, %v889
    %v897 = vadd.s32 %v878, 4294967272
    %v898 = vlaneseq
    %v899 = vshrl.u32 %v898, 7
    %v900 = vsub.s32 %v897, %v899
    %v901 = vrot.slane %v848, %v900
    %vm902 = vcmask 261312
    %v903 = vsel %vm902, %v901, %v896
    %v904 = vadd.s32 %v878, 4294967264
    %v905 = vlaneseq
    %v906 = vshrl.u32 %v905, 7
    %v907 = vsub.s32 %v904, %v906
    %v908 = vrot.slane %v849, %v907
    %vm909 = vcmask 326912
    %v910 = vsel %vm909, %v908, %v903
    %v911 = vadd.s32 %v878, 4294967256
    %v912 = vlaneseq
    %v913 = vshrl.u32 %v912, 7
    %v914 = vsub.s32 %v911, %v913
    %v915 = vrot.slane %v850, %v914
    %vm916 = vcmask 392512
    %v917 = vsel %vm916, %v915, %v910
    %v918 = vadd.s32 %v878, 4294967248
    %v919 = vlaneseq
    %v920 = vshrl.u32 %v919, 7
    %v921 = vsub.s32 %v918, %v920
    %v922 = vrot.slane %v851, %v921
    %vm923 = vcmask 458112
    %v924 = vsel %vm923, %v922, %v917
    %v925 = vadd.s32 %v878, 4294967240
    %v926 = vlaneseq
    %v927 = vshrl.u32 %v926, 7
    %v928 = vsub.s32 %v925, %v927
    %v929 = vrot.slane %v852, %v928
    %vm930 = vcmask 523712
    %v931 = vsel %vm930, %v929, %v924
    %v932 = vadd.s32 %v878, 4294967232
    %v933 = vlaneseq
    %v934 = vshrl.u32 %v933, 7
    %v935 = vsub.s32 %v932, %v934
    %v936 = vrot.slane %v853, %v935
    %vm937 = vcmask 589312
    %v938 = vsel %vm937, %v936, %v931
    %v939 = vadd.s32 %v878, 4294967224
    %v940 = vlaneseq
    %v941 = vshrl.u32 %v940, 7
    %v942 = vsub.s32 %v939, %v941
    %v943 = vrot.slane %v854, %v942
    %vm944 = vcmask 654912
    %v945 = vsel %vm944, %v943, %v938
    %v946 = vadd.s32 %v878, 4294967216
    %v947 = vlaneseq
    %v948 = vshrl.u32 %v947, 7
    %v949 = vsub.s32 %v946, %v948
    %v950 = vrot.slane %v855, %v949
    %vm951 = vcmask 720512
    %v952 = vsel %vm951, %v950, %v945
    %v953 = vadd.s32 %v878, 4294967208
    %v954 = vlaneseq
    %v955 = vshrl.u32 %v954, 7
    %v956 = vsub.s32 %v953, %v955
    %v957 = vrot.slane %v856, %v956
    %vm958 = vcmask 786112
    %v959 = vsel %vm958, %v957, %v952
    %v960 = vadd.s32 %v878, 4294967200
    %v961 = vlaneseq
    %v962 = vshrl.u32 %v961, 7
    %v963 = vsub.s32 %v960, %v962
    %v964 = vrot.slane %v857, %v963
    %vm965 = vcmask 851712
    %v966 = vsel %vm965, %v964, %v959
    %v967 = vadd.s32 %v878, 4294967192
    %v968 = vlaneseq
    %v969 = vshrl.u32 %v968, 7
    %v970 = vsub.s32 %v967, %v969
    %v971 = vrot.slane %v858, %v970
    %vm972 = vcmask 917312
    %v973 = vsel %vm972, %v971, %v966
    %v974 = vadd.s32 %v878, 4294967184
    %v975 = vlaneseq
    %v976 = vshrl.u32 %v975, 7
    %v977 = vsub.s32 %v974, %v976
    %v978 = vrot.slane %v859, %v977
    %vm979 = vcmask 982912
    %v980 = vsel %vm979, %v978, %v973
    %v981 = vadd.s32 %v878, 4294967176
    %v982 = vlaneseq
    %v983 = vshrl.u32 %v982, 7
    %v984 = vsub.s32 %v981, %v983
    %v985 = vrot.slane %v860, %v984
    %vm986 = vcmask 1048512
    %v987 = vsel %vm986, %v985, %v980
    %989 = vst [vmem:[#allocation11] sm:$0x1] %v987
    // Predicated region
    $region54: #{tpu_custom_call.1} parent=1 // pred_check
      _
    $region55: #{tpu_custom_call.1} parent=1 // pred_check_branch
      %991 = sbr.rel (0) target = $region57
    $region56: #{tpu_custom_call.1} parent=1 // pred_region
      %s993 = ssub.s32 16, 16
      %994 = vsyncadd [#allocation5], %s993
      %s996 = sshll.u32 [#allocation11], 4
      %s997 = int_to_ptr.vmem [resolvable:$true] %s996
      %999 = dma.vmem_to_hbm [thread:$0]  %s997, 16, %s9, [#allocation5]
    $region57: #{tpu_custom_call.1} parent=1 // pred_fallthru
      _
    // Predicated region
    $region58: #{tpu_custom_call.1} parent=1 // pred_check
      _
    $region59: #{tpu_custom_call.1} parent=1 // pred_check_branch
      %1001 = sbr.rel (0) target = $region61
    $region60: #{tpu_custom_call.1} parent=1 // pred_region
      %1002 = dma.done [#allocation5], 16
    $region61: #{tpu_custom_call.1} parent=1 // pred_fallthru
      _
    %1003 = vsyncpa [#allocation4], 1
    %1004 = vsyncpa [#allocation7], 1
    %1005 = vsyncpa [#allocation10], 1
    %1006 = vsyncpa [#allocation5], 1

</llo_original>
